<compile_context>
chip_gen: v6e
topology: v6e:2x2x1
jax: 0.10.0
libtpu: 0.0.40
codegen_flags: <defaults>
</compile_context>

<pallas_src>
import functools

import jax
import jax.numpy as jnp
import numpy as np
from jax.experimental import pallas as pl
from jax.experimental.pallas import tpu as pltpu


# _SEL[p, d, a] = 1  iff  floor((p + d - 1) / 2) == a - 1
#   p: output-pixel parity (sub-pixel index) along one spatial axis
#   d: 3x3 conv tap index (0..2) along that axis
#   a: which of the 3 original-image offsets {-1, 0, +1} that tap lands on.
# nearest-exact at integer scale 2 == pixel repetition, so upsampled coordinate
# (2r + p + d - 1) reads original row r + floor((p + d - 1)/2).
_SEL = np.zeros((2, 3, 3), dtype=np.float32)
for _p in range(2):
    for _d in range(3):
        _SEL[_p, _d, ((_p + _d - 1) // 2) + 1] = 1.0

_TAP_OFFSETS = tuple((da, db) for da in (-1, 0, 1) for db in (-1, 0, 1))


def _subpixel_conv_kernel(x_ref, w_ref, b_ref, o_ref, *, W, stack_taps):
    """Sub-pixel output planes = folded weights applied to 9 rolled/masked taps.

    x_ref: (1, Cin, S) bf16        original image, S = H*W on the lane axis
    w_ref: (Mblk, 9*Cin) bf16      folded weights (stacked path), or
           (9, Mblk, Cin) bf16     per-tap folded weights (accumulation path)
    b_ref: (Mblk, 128) f32         bias, pre-broadcast to a full lane tile
    o_ref: (1, Mblk, S)            chunk of the 4*Cout sub-pixel output planes
    """
    Cin = x_ref.shape[1]
    S = x_ref.shape[2]
    Mblk = o_ref.shape[1]

    # 32-bit working copy for the lane rotations (lossless: values are bf16).
    x32 = x_ref[0].astype(jnp.float32)                       # (Cin, S)

    # Hoisted border masks: only 4 distinct masks exist across the 9 taps.
    k = jax.lax.broadcasted_iota(jnp.int32, (1, S), 1)       # flat index r*W + c
    col = k % W
    row_ok = {-1: k >= W, 0: None, 1: k < S - W}             # conv zero-pad top/bottom
    col_ok = {-1: col >= 1, 0: None, 1: col <= W - 2}        # conv zero-pad left/right

    def tap(da, db):
        # t[k] = x[k + da*W + db], zero where the tap falls outside the image.
        s = da * W + db
        t = x32 if s == 0 else pltpu.roll(x32, (-s) % S, axis=1)   # XLU lane rotation
        m = row_ok[da]
        if col_ok[db] is not None:
            m = col_ok[db] if m is None else (m & col_ok[db])
        if m is not None:
            t = jnp.where(m, t, jnp.zeros_like(t))
        return t.astype(jnp.bfloat16)                        # lossless cast for the MXU

    if stack_taps:
        # Tiny-Cin path: one MXU matmul with K = 9*Cin.
        t9 = jnp.concatenate([tap(da, db) for da, db in _TAP_OFFSETS], axis=0)
        acc = jnp.dot(w_ref[...], t9, preferred_element_type=jnp.float32)
    else:
        # Production path (Cin >= 128): 9 accumulated matmuls with K = Cin each
        # (hits the 256-wide MXU contraction cleanly, no im2col block in VMEM).
        acc = jnp.zeros((Mblk, S), jnp.float32)
        for ti, (da, db) in enumerate(_TAP_OFFSETS):
            acc = acc + jnp.dot(w_ref[ti], tap(da, db),
                                preferred_element_type=jnp.float32)

    acc = acc + b_ref[:, 0:1]                                # f32 bias add
    o_ref[0] = acc.astype(o_ref.dtype)                       # lane-dense store


def upsampler_forward(x_nchw, w_oihw, bias, *, stack_taps=None, deinterleave=True):
    """nearest-exact 2x upsample followed by Conv2d(kernel=3, padding=1).

    x_nchw: (N, Cin, H, W); w_oihw: (Cout, Cin, 3, 3) (PyTorch layout); bias: (Cout,)
    returns (N, Cout, 2H, 2W) NCHW (or the (N,2,2,Cout,H,W) planes if deinterleave=False).
    """
    N, Cin, H, W = x_nchw.shape
    Cout = w_oihw.shape[0]
    S = H * W
    M = 4 * Cout
    if stack_taps is None:
        stack_taps = Cin < 128

    # Fold nearest-2x into the conv weights in f32, then cast the result to bf16.
    sel = jnp.asarray(_SEL, dtype=jnp.float32)
    wfold = jnp.einsum("phr,qwc,oihw->pqrcoi", sel, sel, w_oihw.astype(jnp.float32))
    if stack_taps:
        # rows = (pi, pj, co), cols = (row_off, col_off, ci)
        w_arg = wfold.transpose(0, 1, 4, 2, 3, 5).reshape(M, 9 * Cin).astype(jnp.bfloat16)
        w_spec = pl.BlockSpec((None and 0,) if False else (M // (2 if M % 16 == 0 else 1), 9 * Cin),
                              lambda n, j: (j, 0))
    else:
        # tap-major layout: (tap, (pi, pj, co), ci)
        w_arg = wfold.transpose(2, 3, 0, 1, 4, 5).reshape(9, M, Cin).astype(jnp.bfloat16)
        w_spec = None  # set below once Mblk is known

    # Bias stays f32 and is pre-broadcast to 128 lanes (no 1-lane padded block).
    bias_b = jnp.tile(jnp.tile(bias.astype(jnp.float32), 4)[:, None], (1, 128))

    # bf16 activations at the kernel boundary; spatial dim flattened onto lanes.
    x_flat = x_nchw.reshape(N, Cin, S).astype(jnp.bfloat16)

    # Split the 4*Cout output rows into J chunks so there are >= 2 parallel grid units
    # even at N=1 (v7x: 2 TensorCores).  n is the slow grid axis -> the input block is
    # DMA'd once per n and stays resident across j; only the small weight chunk moves.
    J = 2 if M % 16 == 0 else 1
    Mblk = M // J
    if stack_taps:
        w_spec = pl.BlockSpec((Mblk, 9 * Cin), lambda n, j: (j, 0))
    else:
        w_spec = pl.BlockSpec((9, Mblk, Cin), lambda n, j: (0, j, 0))

    planes = pl.pallas_call(
        functools.partial(_subpixel_conv_kernel, W=W, stack_taps=stack_taps),
        out_shape=jax.ShapeDtypeStruct((N, M, S), x_nchw.dtype),
        grid=(N, J),
        in_specs=[
            pl.BlockSpec((1, Cin, S), lambda n, j: (n, 0, 0)),
            w_spec,
            pl.BlockSpec((Mblk, 128), lambda n, j: (j, 0)),
        ],
        out_specs=pl.BlockSpec((1, Mblk, S), lambda n, j: (n, j, 0)),
        compiler_params=pltpu.CompilerParams(
            dimension_semantics=("parallel", "parallel"),
            vmem_limit_bytes=32 * 1024 * 1024,
        ),
    )(x_flat, w_arg, bias_b)

    planes = planes.reshape(N, 2, 2, Cout, H, W)             # (n, pi, pj, co, r, c)
    if not deinterleave:
        return planes
    out = planes.transpose(0, 3, 4, 1, 5, 2)                 # (n, co, r, pi, c, pj)
    return out.reshape(N, Cout, 2 * H, 2 * W)


def _reference(x_nchw, w_oihw, bias):
    # Pure-JAX reference (nearest-exact 2x == pixel repetition for integer scale 2).
    up = jnp.repeat(jnp.repeat(x_nchw, 2, axis=2), 2, axis=3)
    y = jax.lax.conv_general_dilated(
        up, w_oihw, window_strides=(1, 1), padding=((1, 1), (1, 1)),
        dimension_numbers=("NCHW", "OIHW", "NCHW"))
    return y + bias[None, :, None, None]


if __name__ == "__main__":
    # Small shapes consistent with UpSampler(size=8): x is NCHW (2, 8, 16, 16).
    N, C, H, W = 2, 8, 16, 16

    key = jax.random.PRNGKey(0)
    kx, kw, kb = jax.random.split(key, 3)

    x = jax.random.normal(kx, (N, C, H, W), dtype=jnp.float32)

    # Deterministic synthetic Conv2d parameters, PyTorch OIHW layout and init bounds.
    fan_in = C * 3 * 3
    bound = 1.0 / (fan_in ** 0.5)
    w_oihw = jax.random.uniform(kw, (C, C, 3, 3), minval=-bound, maxval=bound,
                                dtype=jnp.float32)
    bias = jax.random.uniform(kb, (C,), minval=-bound, maxval=bound,
                              dtype=jnp.float32)

    # f32 reference; pre-round the input to bf16 so only the (bf16) weight rounding of
    # the kernel remains as a difference.  Tolerance reflects bf16 operands.
    x_q = x.astype(jnp.bfloat16).astype(jnp.float32)
    y_ref = _reference(x_q, w_oihw, bias)

    for stack in (True, False):   # exercise both the stacked-K and 9-matmul paths
        fwd = jax.jit(functools.partial(upsampler_forward, stack_taps=stack))
        y = jax.block_until_ready(fwd(x, w_oihw, bias))
        assert y.shape == (N, C, 2 * H, 2 * W)
        assert jnp.allclose(y, y_ref, atol=7.5e-2, rtol=7.5e-2), (
            f"mismatch vs reference (stack_taps={stack})")

    print("KERNEL_OK")
</pallas_src>

<mosaic_0001>
module attributes {stable_mosaic.version = 11 : i64} {
  func.func @_subpixel_conv_kernel(%arg0: i32, %arg1: i32, %arg2: memref<1x8x256xbf16, #tpu.memory_space<vmem>>, %arg3: memref<16x72xbf16, #tpu.memory_space<vmem>>, %arg4: memref<16x128xf32, #tpu.memory_space<vmem>>, %arg5: memref<1x16x256xf32, #tpu.memory_space<vmem>>) attributes {dimension_semantics = [#tpu.dimension_semantics<parallel>, #tpu.dimension_semantics<parallel>], iteration_bounds = array<i64: 2, 2>, scalar_prefetch = 0 : i64, scratch_operands = 0 : i64, tpu.core_type = #tpu.core_type<tc>, window_params = [{transform_indices = @transform_0, window_bounds = array<i64: 1, 8, 256>}, {transform_indices = @transform_1, window_bounds = array<i64: 16, 72>}, {transform_indices = @transform_2, window_bounds = array<i64: 16, 128>}, {transform_indices = @transform_3, window_bounds = array<i64: 1, 16, 256>}]} {
    %c0 = arith.constant 0 : index
    %c0_0 = arith.constant 0 : index
    %c0_1 = arith.constant 0 : index
    %0 = vector.load %arg2[%c0, %c0_0, %c0_1] : memref<1x8x256xbf16, #tpu.memory_space<vmem>>, vector<1x8x256xbf16>
    %1 = vector.shape_cast %0 : vector<1x8x256xbf16> to vector<8x256xbf16>
    %2 = arith.extf %1 : vector<8x256xbf16> to vector<8x256xf32>
    %3 = tpu.iota {dimensions = array<i32: 1>} : vector<1x256xi32>
    %c16_i32 = arith.constant 16 : i32
    %c0_i32 = arith.constant 0 : i32
    %4 = arith.cmpi eq, %c16_i32, %c0_i32 : i32
    %c1_i32 = arith.constant 1 : i32
    %5 = arith.select %4, %c1_i32, %c16_i32 : i32
    %6 = vector.broadcast %5 : i32 to vector<1x256xi32>
    %7 = arith.remsi %3, %6 : vector<1x256xi32>
    %c0_i32_2 = arith.constant 0 : i32
    %8 = vector.broadcast %c0_i32_2 : i32 to vector<1x256xi32>
    %9 = arith.cmpi ne, %7, %8 : vector<1x256xi32>
    %c0_i32_3 = arith.constant 0 : i32
    %10 = vector.broadcast %c0_i32_3 : i32 to vector<1x256xi32>
    %11 = arith.cmpi slt, %7, %10 : vector<1x256xi32>
    %c0_i32_4 = arith.constant 0 : i32
    %12 = arith.cmpi slt, %5, %c0_i32_4 : i32
    %13 = vector.broadcast %12 : i1 to vector<1x256xi1>
    %14 = vector.broadcast %13 : vector<1x256xi1> to vector<1x256xi1>
    %15 = arith.xori %11, %14 : vector<1x256xi1>
    %16 = arith.andi %15, %9 : vector<1x256xi1>
    %17 = vector.broadcast %5 : i32 to vector<1x256xi32>
    %18 = arith.addi %7, %17 : vector<1x256xi32>
    %19 = arith.select %16, %18, %7 : vector<1x256xi1>, vector<1x256xi32>
    %c16_i32_5 = arith.constant 16 : i32
    %20 = vector.broadcast %c16_i32_5 : i32 to vector<1x256xi32>
    %21 = arith.cmpi sge, %3, %20 : vector<1x256xi32>
    %c240_i32 = arith.constant 240 : i32
    %22 = vector.broadcast %c240_i32 : i32 to vector<1x256xi32>
    %23 = arith.cmpi slt, %3, %22 : vector<1x256xi32>
    %c1_i32_6 = arith.constant 1 : i32
    %24 = vector.broadcast %c1_i32_6 : i32 to vector<1x256xi32>
    %25 = arith.cmpi sge, %19, %24 : vector<1x256xi32>
    %c14_i32 = arith.constant 14 : i32
    %26 = vector.broadcast %c14_i32 : i32 to vector<1x256xi32>
    %27 = arith.cmpi sle, %19, %26 : vector<1x256xi32>
    %c17_i32 = arith.constant 17 : i32
    %28 = tpu.dynamic_rotate %2 by %c17_i32 dim 1 : vector<8x256xf32>, i32 -> vector<8x256xf32>
    %29 = arith.andi %21, %25 : vector<1x256xi1>
    %cst = arith.constant 0.000000e+00 : f32
    %30 = vector.broadcast %cst : f32 to vector<8x256xf32>
    %31 = vector.shape_cast %29 : vector<1x256xi1> to vector<1x256xi1>
    %32 = vector.broadcast %31 : vector<1x256xi1> to vector<8x256xi1>
    %33 = arith.select %32, %28, %30 : vector<8x256xi1>, vector<8x256xf32>
    %34 = arith.truncf %33 : vector<8x256xf32> to vector<8x256xbf16>
    %c16_i32_7 = arith.constant 16 : i32
    %35 = tpu.dynamic_rotate %2 by %c16_i32_7 dim 1 : vector<8x256xf32>, i32 -> vector<8x256xf32>
    %cst_8 = arith.constant 0.000000e+00 : f32
    %36 = vector.broadcast %cst_8 : f32 to vector<8x256xf32>
    %37 = vector.shape_cast %21 : vector<1x256xi1> to vector<1x256xi1>
    %38 = vector.broadcast %37 : vector<1x256xi1> to vector<8x256xi1>
    %39 = arith.select %38, %35, %36 : vector<8x256xi1>, vector<8x256xf32>
    %40 = arith.truncf %39 : vector<8x256xf32> to vector<8x256xbf16>
    %c15_i32 = arith.constant 15 : i32
    %41 = tpu.dynamic_rotate %2 by %c15_i32 dim 1 : vector<8x256xf32>, i32 -> vector<8x256xf32>
    %42 = arith.andi %21, %27 : vector<1x256xi1>
    %cst_9 = arith.constant 0.000000e+00 : f32
    %43 = vector.broadcast %cst_9 : f32 to vector<8x256xf32>
    %44 = vector.shape_cast %42 : vector<1x256xi1> to vector<1x256xi1>
    %45 = vector.broadcast %44 : vector<1x256xi1> to vector<8x256xi1>
    %46 = arith.select %45, %41, %43 : vector<8x256xi1>, vector<8x256xf32>
    %47 = arith.truncf %46 : vector<8x256xf32> to vector<8x256xbf16>
    %c1_i32_10 = arith.constant 1 : i32
    %48 = tpu.dynamic_rotate %2 by %c1_i32_10 dim 1 : vector<8x256xf32>, i32 -> vector<8x256xf32>
    %cst_11 = arith.constant 0.000000e+00 : f32
    %49 = vector.broadcast %cst_11 : f32 to vector<8x256xf32>
    %50 = vector.shape_cast %25 : vector<1x256xi1> to vector<1x256xi1>
    %51 = vector.broadcast %50 : vector<1x256xi1> to vector<8x256xi1>
    %52 = arith.select %51, %48, %49 : vector<8x256xi1>, vector<8x256xf32>
    %53 = arith.truncf %52 : vector<8x256xf32> to vector<8x256xbf16>
    %54 = arith.truncf %2 : vector<8x256xf32> to vector<8x256xbf16>
    %c255_i32 = arith.constant 255 : i32
    %55 = tpu.dynamic_rotate %2 by %c255_i32 dim 1 : vector<8x256xf32>, i32 -> vector<8x256xf32>
    %cst_12 = arith.constant 0.000000e+00 : f32
    %56 = vector.broadcast %cst_12 : f32 to vector<8x256xf32>
    %57 = vector.shape_cast %27 : vector<1x256xi1> to vector<1x256xi1>
    %58 = vector.broadcast %57 : vector<1x256xi1> to vector<8x256xi1>
    %59 = arith.select %58, %55, %56 : vector<8x256xi1>, vector<8x256xf32>
    %60 = arith.truncf %59 : vector<8x256xf32> to vector<8x256xbf16>
    %c241_i32 = arith.constant 241 : i32
    %61 = tpu.dynamic_rotate %2 by %c241_i32 dim 1 : vector<8x256xf32>, i32 -> vector<8x256xf32>
    %62 = arith.andi %23, %25 : vector<1x256xi1>
    %cst_13 = arith.constant 0.000000e+00 : f32
    %63 = vector.broadcast %cst_13 : f32 to vector<8x256xf32>
    %64 = vector.shape_cast %62 : vector<1x256xi1> to vector<1x256xi1>
    %65 = vector.broadcast %64 : vector<1x256xi1> to vector<8x256xi1>
    %66 = arith.select %65, %61, %63 : vector<8x256xi1>, vector<8x256xf32>
    %67 = arith.truncf %66 : vector<8x256xf32> to vector<8x256xbf16>
    %c240_i32_14 = arith.constant 240 : i32
    %68 = tpu.dynamic_rotate %2 by %c240_i32_14 dim 1 : vector<8x256xf32>, i32 -> vector<8x256xf32>
    %cst_15 = arith.constant 0.000000e+00 : f32
    %69 = vector.broadcast %cst_15 : f32 to vector<8x256xf32>
    %70 = vector.shape_cast %23 : vector<1x256xi1> to vector<1x256xi1>
    %71 = vector.broadcast %70 : vector<1x256xi1> to vector<8x256xi1>
    %72 = arith.select %71, %68, %69 : vector<8x256xi1>, vector<8x256xf32>
    %73 = arith.truncf %72 : vector<8x256xf32> to vector<8x256xbf16>
    %c239_i32 = arith.constant 239 : i32
    %74 = tpu.dynamic_rotate %2 by %c239_i32 dim 1 : vector<8x256xf32>, i32 -> vector<8x256xf32>
    %75 = arith.andi %23, %27 : vector<1x256xi1>
    %cst_16 = arith.constant 0.000000e+00 : f32
    %76 = vector.broadcast %cst_16 : f32 to vector<8x256xf32>
    %77 = vector.shape_cast %75 : vector<1x256xi1> to vector<1x256xi1>
    %78 = vector.broadcast %77 : vector<1x256xi1> to vector<8x256xi1>
    %79 = arith.select %78, %74, %76 : vector<8x256xi1>, vector<8x256xf32>
    %80 = arith.truncf %79 : vector<8x256xf32> to vector<8x256xbf16>
    %81 = tpu.concatenate %34, %40, %47, %53, %54, %60, %67, %73, %80 in 0 : vector<8x256xbf16>, vector<8x256xbf16>, vector<8x256xbf16>, vector<8x256xbf16>, vector<8x256xbf16>, vector<8x256xbf16>, vector<8x256xbf16>, vector<8x256xbf16>, vector<8x256xbf16> -> vector<72x256xbf16>
    %c0_17 = arith.constant 0 : index
    %c0_18 = arith.constant 0 : index
    %82 = vector.load %arg3[%c0_17, %c0_18] : memref<16x72xbf16, #tpu.memory_space<vmem>>, vector<16x72xbf16>
    %cst_19 = arith.constant dense<0.000000e+00> : vector<16x256xf32>
    %83 = tpu.matmul %82, %81, %cst_19 {dimension_numbers = #tpu.dot_dimension_numbers<[1], [0], [0], [1], [0, 0, 1, 1], [], []>} : vector<16x72xbf16>, vector<72x256xbf16>, vector<16x256xf32> -> vector<16x256xf32>
    %c0_20 = arith.constant 0 : index
    %c0_21 = arith.constant 0 : index
    %84 = vector.load %arg4[%c0_20, %c0_21] : memref<16x128xf32, #tpu.memory_space<vmem>>, vector<16x1xf32>
    %85 = vector.broadcast %84 : vector<16x1xf32> to vector<16x256xf32>
    %86 = arith.addf %83, %85 : vector<16x256xf32>
    %c0_22 = arith.constant 0 : index
    %c0_23 = arith.constant 0 : index
    %c0_24 = arith.constant 0 : index
    %87 = vector.load %arg5[%c0_22, %c0_23, %c0_24] : memref<1x16x256xf32, #tpu.memory_space<vmem>>, vector<1x16x256xf32>
    %88 = vector.shape_cast %87 : vector<1x16x256xf32> to vector<16x256xf32>
    %89 = vector.shape_cast %86 : vector<16x256xf32> to vector<1x16x256xf32>
    tpu.vector_store %arg5[%c0_22, %c0_23, %c0_24], %89 {strides = array<i32>} : memref<1x16x256xf32, #tpu.memory_space<vmem>>, vector<1x16x256xf32>,
    return
  }
  func.func @transform_0(%arg0: i32, %arg1: i32) -> (i32, i32, i32) {
    %c0_i32 = arith.constant 0 : i32
    %c0_i32_0 = arith.constant 0 : i32
    %c0_i32_1 = arith.constant 0 : i32
    return %arg0, %c0_i32, %c0_i32_0 : i32, i32, i32
  }
  func.func @transform_1(%arg0: i32, %arg1: i32) -> (i32, i32) {
    %c0_i32 = arith.constant 0 : i32
    %c0_i32_0 = arith.constant 0 : i32
    return %arg1, %c0_i32 : i32, i32
  }
  func.func @transform_2(%arg0: i32, %arg1: i32) -> (i32, i32) {
    %c0_i32 = arith.constant 0 : i32
    %c0_i32_0 = arith.constant 0 : i32
    return %arg1, %c0_i32 : i32, i32
  }
  func.func @transform_3(%arg0: i32, %arg1: i32) -> (i32, i32, i32) {
    %c0_i32 = arith.constant 0 : i32
    %c0_i32_0 = arith.constant 0 : i32
    return %arg0, %arg1, %c0_i32 : i32, i32, i32
  }
}

</mosaic_0001>

<llo_original>
// kernel: tile.12
$region0: #{tile.12}
  #allocation0 [shape = 's32[1]{0}', space=sflag, size = 0x4, scoped, tag = 'scoped memory for tile.12']
  %s0 = inlined_call_operand.vmem [shape: f32[8], index: 0, kind: input, shape index: {}]
  %s1 = inlined_call_operand.vmem [shape: f32[4,8], index: 1, kind: output, shape index: {}]
  // Predicated region
  $region2: #{tile.12} parent=0 // pred_check
    _
  $region3: #{tile.12} parent=0 // pred_check_branch
    %3 = sbr.rel (0) target = $region5
  $region4: #{tile.12} parent=0 // pred_region
    _
  $region5: #{tile.12} parent=0 // pred_fallthru
    _
  %v4 = vld [vmem:[%s0] ss:$0 sm:$0xff]
  %5 = vst [vmem:[%s1] sm:$0xf] %v4

// kernel: upsampler_forward.1
$region0: #{upsampler_forward.1}
  #allocation0 [shape = 'u32[]', space=smem, size = 0x4, offset = 0x4, fixed_abs, tag = 'smem constant byte address 0x4 - core index']
  #allocation1 [shape = 'u32[144,128]{1,0:T(1,128)}', space=vmem, size = 0x12000, scoped, tag = 'internal scratch']
  %s0 = inlined_call_operand.vmem [shape: bf16[2,8,256], index: 0, kind: input, shape index: {}]
  %s1 = inlined_call_operand.vmem [shape: bf16[32,72], index: 1, kind: input, shape index: {}]
  %s2 = inlined_call_operand.vmem [shape: f32[32,128], index: 2, kind: input, shape index: {}]
  %s3 = inlined_call_operand.vmem [shape: f32[2,32,256], index: 3, kind: output, shape index: {}]
  %s4 = sld [smem:[#allocation0]]
  $region45: #{upsampler_forward.1} parent=0
    _
  %s6 = ssub.s32 1, %s4
  %s7 = scalar_select 0, %s6, %s4
  loop: start=0, step=1, limit=6
  $region2: #{upsampler_forward.1} parent=0 // loop_pre_header
    _
  $region3: #{upsampler_forward.1} parent=0 // loop_header
    %s9 = sphi 0, %s13
    %p10 = scmp.ge.s32.totalorder %s9, 6
    %s16 = sphi 0, %s28
    %s17 = sphi 0, %s24
    %s18 = sphi 0, %s16
    %s19 = sphi 0, %s17
    %s20 = sphi 0, %s18
    %s21 = sphi 0, %s19
    %s31 = sphi 0, %s33
    %s34 = sphi 0, %s31
    %s35 = sphi 0, %s34
    %s51 = sphi 0, %s35
    %s57 = sphi 0, %s59
    %s60 = sphi 0, %s57
    %s61 = sphi 0, %s60
    %s77 = sphi 0, %s61
    %s83 = sphi 0, %s85
    %s86 = sphi 0, %s83
    %s87 = sphi 0, %s86
    %s103 = sphi 0, %s87
    %s111 = sphi 0, %s113
    %s114 = sphi 0, %s111
    %s115 = sphi 0, %s114
    %s131 = sphi 0, %s115
  $region4: #{upsampler_forward.1} parent=0 // loop_header_branch
    %12 = sbr.rel (%p10) target = $region8
  $region5: #{upsampler_forward.1} parent=0 // loop_body
    %s14 = ssub.s32 %s9, 1
    %s15 = ssub.s32 %s9, 2
    %s22 = sadd.s32 1, %s17
    %p23 = scmp.ge.s32.totalorder %s22, 2
    %s24 = scalar_select %p23, 0, %s22
    %s25 = sadd.s32 1, %s16
    %s26 = scalar_select %p23, %s25, %s16
    %p27 = scmp.ge.s32.totalorder %s26, 2
    %s28 = scalar_select %p27, 0, %s26
    %s29 = ssub.s32 %s16, %s28
    %p30 = scmp.eq.s32.totalorder %s29, 0
    %s32 = sadd.s32 %s31, 1
    %s33 = scalar_select %p30, %s31, %s32
    %p36 = pneg %p30
    %p37 = scmp.eq.s32.totalorder %s9, 3
    %p38 = por %p36, %p37
    %p39 = scmp.ne.s32.totalorder %s31, %s34
    %p40 = scmp.eq.s32.totalorder %s9, 0
    %p41 = por %p39, %p40
    %p42 = scmp.ne.s32.totalorder %s31, %s34
    %p43 = scmp.eq.s32.totalorder %s14, 3
    %p44 = por %p42, %p43
    %p45 = scmp.ne.s32.totalorder %s34, %s35
    %p46 = scmp.eq.s32.totalorder %s14, 0
    %p47 = por %p45, %p46
    %p48 = scmp.ne.s32.totalorder %s34, %s35
    %p49 = scmp.eq.s32.totalorder %s15, 3
    %p50 = por %p48, %p49
    %p52 = scmp.ne.s32.totalorder %s35, %s51
    %p53 = scmp.eq.s32.totalorder %s15, 0
    %p54 = por %p52, %p53
    %s55 = ssub.s32 %s17, %s24
    %p56 = scmp.eq.s32.totalorder %s55, 0
    %s58 = sadd.s32 %s57, 1
    %s59 = scalar_select %p56, %s57, %s58
    %p62 = pneg %p56
    %p63 = scmp.eq.s32.totalorder %s9, 3
    %p64 = por %p62, %p63
    %p65 = scmp.ne.s32.totalorder %s57, %s60
    %p66 = scmp.eq.s32.totalorder %s9, 0
    %p67 = por %p65, %p66
    %p68 = scmp.ne.s32.totalorder %s57, %s60
    %p69 = scmp.eq.s32.totalorder %s14, 3
    %p70 = por %p68, %p69
    %p71 = scmp.ne.s32.totalorder %s60, %s61
    %p72 = scmp.eq.s32.totalorder %s14, 0
    %p73 = por %p71, %p72
    %p74 = scmp.ne.s32.totalorder %s60, %s61
    %p75 = scmp.eq.s32.totalorder %s15, 3
    %p76 = por %p74, %p75
    %p78 = scmp.ne.s32.totalorder %s61, %s77
    %p79 = scmp.eq.s32.totalorder %s15, 0
    %p80 = por %p78, %p79
    %s81 = ssub.s32 %s17, %s24
    %p82 = scmp.eq.s32.totalorder %s81, 0
    %s84 = sadd.s32 %s83, 1
    %s85 = scalar_select %p82, %s83, %s84
    %p88 = pneg %p82
    %p89 = scmp.eq.s32.totalorder %s9, 3
    %p90 = por %p88, %p89
    %p91 = scmp.ne.s32.totalorder %s83, %s86
    %p92 = scmp.eq.s32.totalorder %s9, 0
    %p93 = por %p91, %p92
    %p94 = scmp.ne.s32.totalorder %s83, %s86
    %p95 = scmp.eq.s32.totalorder %s14, 3
    %p96 = por %p94, %p95
    %p97 = scmp.ne.s32.totalorder %s86, %s87
    %p98 = scmp.eq.s32.totalorder %s14, 0
    %p99 = por %p97, %p98
    %p100 = scmp.ne.s32.totalorder %s86, %s87
    %p101 = scmp.eq.s32.totalorder %s15, 3
    %p102 = por %p100, %p101
    %p104 = scmp.ne.s32.totalorder %s87, %s103
    %p105 = scmp.eq.s32.totalorder %s15, 0
    %p106 = por %p104, %p105
    %s107 = ssub.s32 %s16, %s28
    %s108 = ssub.s32 %s17, %s24
    %s109 = sor.u32 %s107, %s108
    %p110 = scmp.eq.s32.totalorder %s109, 0
    %s112 = sadd.s32 %s111, 1
    %s113 = scalar_select %p110, %s111, %s112
    %p116 = pneg %p110
    %p117 = scmp.eq.s32.totalorder %s9, 3
    %p118 = por %p116, %p117
    %p119 = scmp.ne.s32.totalorder %s111, %s114
    %p120 = scmp.eq.s32.totalorder %s9, 0
    %p121 = por %p119, %p120
    %p122 = scmp.ne.s32.totalorder %s111, %s114
    %p123 = scmp.eq.s32.totalorder %s14, 3
    %p124 = por %p122, %p123
    %p125 = scmp.ne.s32.totalorder %s114, %s115
    %p126 = scmp.eq.s32.totalorder %s14, 0
    %p127 = por %p125, %p126
    %p128 = scmp.ne.s32.totalorder %s114, %s115
    %p129 = scmp.eq.s32.totalorder %s15, 3
    %p130 = por %p128, %p129
    %p132 = scmp.ne.s32.totalorder %s115, %s131
    %p133 = scmp.eq.s32.totalorder %s15, 0
    %p134 = por %p132, %p133
    %p135 = scmp.le.s32.totalorder 1, %s9
    %p136 = scmp.lt.s32.totalorder %s9, 5
    %p137 = pnand %p135, %p136
    %p138 = pneg %p137
    // Predicated region
    $region9: #{upsampler_forward.1} parent=5 // pred_check
      _
    $region10: #{upsampler_forward.1} parent=5 // pred_check_branch
      %140 = sbr.rel (%p137) target = $region12
    $region11: #{upsampler_forward.1} parent=5 // pred_region
      %s141 = ssub.s32 %s9, 1
    $region12: #{upsampler_forward.1} parent=5 // pred_fallthru
      _
    %p142 = scmp.lt.s32.totalorder %s9, 4
    // Predicated region
    $region13: #{upsampler_forward.1} parent=5 // pred_check
      %p143 = pneg %p142
    $region14: #{upsampler_forward.1} parent=5 // pred_check_branch
      %145 = sbr.rel (%p143) target = $region16
    $region15: #{upsampler_forward.1} parent=5 // pred_region
      // Predicated region
      $region17: #{upsampler_forward.1} parent=15 // pred_check
        %p146 = pneg %p41
      $region18: #{upsampler_forward.1} parent=15 // pred_check_branch
        %148 = sbr.rel (%p146) target = $region20
      $region19: #{upsampler_forward.1} parent=15 // pred_region
        %p149 = scmp.lt.s32.totalorder %s16, 1
        %s150 = scalar_select %p149, %s16, 1
        %s151 = smul.addr %s150, 2
        %s152 = smul.addr %s151, 4
        %s153 = scalar_lea.vmem %s0, %s152
      $region20: #{upsampler_forward.1} parent=15 // pred_fallthru
        _
      // Predicated region
      $region21: #{upsampler_forward.1} parent=15 // pred_check
        %p154 = pneg %p67
      $region22: #{upsampler_forward.1} parent=15 // pred_check_branch
        %156 = sbr.rel (%p154) target = $region24
      $region23: #{upsampler_forward.1} parent=15 // pred_region
        %s157 = smul.u32 2, %s17
        %p158 = scmp.lt.s32.totalorder %s157, 3
        %s159 = scalar_select %p158, %s157, 3
        %s160 = smul.addr %s159, 4
        %s161 = scalar_lea.vmem %s1, %s160
        %s162 = smul.u32 2, %s17
      $region24: #{upsampler_forward.1} parent=15 // pred_fallthru
        _
      // Predicated region
      $region25: #{upsampler_forward.1} parent=15 // pred_check
        %p163 = pneg %p93
      $region26: #{upsampler_forward.1} parent=15 // pred_check_branch
        %165 = sbr.rel (%p163) target = $region28
      $region27: #{upsampler_forward.1} parent=15 // pred_region
        %s166 = smul.u32 2, %s17
        %p167 = scmp.lt.s32.totalorder %s166, 3
        %s168 = scalar_select %p167, %s166, 3
        %s169 = smul.addr %s168, 8
        %s170 = scalar_lea.vmem %s2, %s169
        %s171 = smul.u32 2, %s17
      $region28: #{upsampler_forward.1} parent=15 // pred_fallthru
        _
    $region16: #{upsampler_forward.1} parent=5 // pred_fallthru
      _
    %p172 = scmp.le.s32.totalorder 1, %s9
    %p173 = scmp.lt.s32.totalorder %s9, 5
    %p174 = pnand %p172, %p173
    %p175 = pneg %p174
    // Predicated region
    $region29: #{upsampler_forward.1} parent=5 // pred_check
      _
    $region30: #{upsampler_forward.1} parent=5 // pred_check_branch
      %177 = sbr.rel (%p174) target = $region32
    $region31: #{upsampler_forward.1} parent=5 // pred_region
      %s178 = ssub.s32 %s9, 1
      %p179 = scmp.lt.s32.totalorder %s18, 1
      %s180 = scalar_select %p179, %s18, 1
      %s181 = smul.addr %s180, 2
      %s182 = smul.addr %s181, 4
      %s183 = scalar_lea.vmem %s0, %s182
      %p184 = pneg %p47
      %p185 = pneg %p44
      %s186 = smul.u32 2, %s19
      %p187 = scmp.lt.s32.totalorder %s186, 3
      %s188 = scalar_select %p187, %s186, 3
      %s189 = smul.addr %s188, 4
      %s190 = scalar_lea.vmem %s1, %s189
      %p191 = pneg %p73
      %p192 = pneg %p70
      %s193 = smul.u32 2, %s19
      %p194 = scmp.lt.s32.totalorder %s193, 3
      %s195 = scalar_select %p194, %s193, 3
      %s196 = smul.addr %s195, 8
      %s197 = scalar_lea.vmem %s2, %s196
      %p198 = pneg %p99
      %p199 = pneg %p96
      %p200 = pneg %p127
      %p201 = pneg %p124
      %s202 = smul.u32 2, %s19
      %p203 = scmp.lt.s32.totalorder %s18, 1
      %s204 = scalar_select %p203, %s18, 1
      %p205 = scmp.lt.s32.totalorder %s202, 3
      %s206 = scalar_select %p205, %s202, 3
      %s207 = smul.addr %s206, 2
      %s208 = smul.addr %s204, 8
      %s209 = sadd.s32 %s207, %s208
      %s210 = smul.addr %s209, 8
      %s211 = scalar_lea.vmem %s3, %s210
      %p212 = scmp.lt.s32.totalorder %s18, 1
      %s213 = scalar_select %p212, %s18, 1
      %s214 = smul.addr %s213, 2
      %s215 = smul.addr %s214, 4
      %s216 = scalar_lea.vmem %s0, %s215
      %s217 = smul.u32 2, %s19
      %p218 = scmp.lt.s32.totalorder %s217, 3
      %s219 = scalar_select %p218, %s217, 3
      %s220 = smul.addr %s219, 4
      %s221 = scalar_lea.vmem %s1, %s220
      %s222 = smul.u32 2, %s19
      %s223 = smul.u32 2, %s19
      %p224 = scmp.lt.s32.totalorder %s223, 3
      %s225 = scalar_select %p224, %s223, 3
      %s226 = smul.addr %s225, 8
      %s227 = scalar_lea.vmem %s2, %s226
      %s228 = smul.u32 2, %s19
      %s229 = smul.u32 2, %s19
      %p230 = scmp.lt.s32.totalorder %s18, 1
      %s231 = scalar_select %p230, %s18, 1
      %p232 = scmp.lt.s32.totalorder %s229, 3
      %s233 = scalar_select %p232, %s229, 3
      %s234 = smul.addr %s233, 2
      %s235 = smul.addr %s231, 8
      %s236 = sadd.s32 %s234, %s235
      %s237 = smul.addr %s236, 8
      %s238 = scalar_lea.vmem %s3, %s237
      %s239 = smul.u32 2, %s19
      %v241 = vld [vmem:[%s216] sm:$0xff]
      %v242 = vunpack.c.l.bf16 %v241
      %v243 = vunpack.c.h.bf16 %v241
      %v244 = vlaneseq
      %v245 = vand.u32 %v244, 127
      %v246 = vadd.s32 %v245, 128
      %vm247 = vcmp.lt.s32.totalorder %v245, 0
      %v248 = vsub.s32 0, %v245
      %v249 = vsel %vm247, %v248, %v245
      %v250 = vshrl.u32 %v249, 4
      %v251 = vand.u32 %v249, 15
      %v252 = vsub.s32 0, %v251
      %v253 = vsel %vm247, %v252, %v251
      %vm254 = vcmp.lt.s32.totalorder %v246, 0
      %v255 = vsub.s32 0, %v246
      %v256 = vsel %vm254, %v255, %v246
      %v257 = vshrl.u32 %v256, 4
      %v258 = vand.u32 %v256, 15
      %v259 = vsub.s32 0, %v258
      %v260 = vsel %vm254, %v259, %v258
      %vm261 = vcmp.ne.s32.totalorder %v253, 0
      %vm262 = vcmp.ne.s32.totalorder %v260, 0
      %vm263 = vcmp.lt.s32.totalorder %v253, 0
      %vm264 = vcmp.lt.s32.totalorder %v260, 0
      %vm265 = vmand %vm263, %vm261
      %vm266 = vmand %vm264, %vm262
      %v267 = vadd.s32 %v253, 16
      %v268 = vadd.s32 %v260, 16
      %v269 = vsel %vm265, %v267, %v253
      %v270 = vsel %vm266, %v268, %v260
      %vm271 = vcmp.ge.s32.totalorder %v245, 16
      %vm272 = vcmp.ge.s32.totalorder %v246, 16
      %vm273 = vcmp.lt.s32.totalorder %v245, 240
      %vm274 = vcmp.lt.s32.totalorder %v246, 240
      %vm275 = vcmp.ge.s32.totalorder %v269, 1
      %vm276 = vcmp.ge.s32.totalorder %v270, 1
      %vm277 = vcmp.le.s32.totalorder %v269, 14
      %vm278 = vcmp.le.s32.totalorder %v270, 14
      %279 = vrot.lane.b32.xlu0 %v242, 17
      %v280 = vpop.permute.xlu0 %279
      %281 = vrot.lane.b32.xlu0 %v243, 17
      %v282 = vpop.permute.xlu0 %281
      %vm283 = vcmp.lt.s32.totalorder %v245, 17
      %v284 = vsel %vm283, %v280, %v282
      %v285 = vsel %vm283, %v282, %v280
      %vm286 = vmand %vm271, %vm275
      %vm287 = vmand %vm272, %vm276
      %v288 = vsel %vm286, 1, 0
      %v289 = vsel %vm287, 1, 0
      %vm290 = vcmp.eq.s32.totalorder %v288, 1
      %vm291 = vcmp.eq.s32.totalorder %v289, 1
      %v292 = vsel %vm290, %v285, 0.0
      %v293 = vsel %vm291, %v284, 0.0
      %v294 = vpack.c.bf16 %v292, %v292
      %v295 = vpack.c.bf16 %v293, %v293
      %296 = vrot.lane.b32.xlu0 %v242, 16
      %v297 = vpop.permute.xlu0 %296
      %298 = vrot.lane.b32.xlu0 %v243, 16
      %v299 = vpop.permute.xlu0 %298
      %vm300 = vcmp.lt.s32.totalorder %v245, 16
      %v301 = vsel %vm300, %v297, %v299
      %v302 = vsel %vm300, %v299, %v297
      %v303 = vsel %vm271, 1, 0
      %v304 = vsel %vm272, 1, 0
      %vm305 = vcmp.eq.s32.totalorder %v303, 1
      %vm306 = vcmp.eq.s32.totalorder %v304, 1
      %v307 = vsel %vm305, %v302, 0.0
      %v308 = vsel %vm306, %v301, 0.0
      %v309 = vpack.c.bf16 %v307, %v307
      %v310 = vpack.c.bf16 %v308, %v308
      %311 = vrot.lane.b32.xlu0 %v242, 15
      %v312 = vpop.permute.xlu0 %311
      %313 = vrot.lane.b32.xlu0 %v243, 15
      %v314 = vpop.permute.xlu0 %313
      %vm315 = vcmp.lt.s32.totalorder %v245, 15
      %v316 = vsel %vm315, %v312, %v314
      %v317 = vsel %vm315, %v314, %v312
      %vm318 = vmand %vm271, %vm277
      %vm319 = vmand %vm272, %vm278
      %v320 = vsel %vm318, 1, 0
      %v321 = vsel %vm319, 1, 0
      %vm322 = vcmp.eq.s32.totalorder %v320, 1
      %vm323 = vcmp.eq.s32.totalorder %v321, 1
      %v324 = vsel %vm322, %v317, 0.0
      %v325 = vsel %vm323, %v316, 0.0
      %v326 = vpack.c.bf16 %v324, %v324
      %v327 = vpack.c.bf16 %v325, %v325
      %328 = vrot.lane.b32.xlu0 %v242, 1
      %v329 = vpop.permute.xlu0 %328
      %330 = vrot.lane.b32.xlu0 %v243, 1
      %v331 = vpop.permute.xlu0 %330
      %vm332 = vcmp.lt.s32.totalorder %v245, 1
      %v333 = vsel %vm332, %v329, %v331
      %v334 = vsel %vm332, %v331, %v329
      %v335 = vsel %vm275, 1, 0
      %v336 = vsel %vm276, 1, 0
      %vm337 = vcmp.eq.s32.totalorder %v335, 1
      %vm338 = vcmp.eq.s32.totalorder %v336, 1
      %v339 = vsel %vm337, %v334, 0.0
      %v340 = vsel %vm338, %v333, 0.0
      %v341 = vpack.c.bf16 %v339, %v339
      %v342 = vpack.c.bf16 %v340, %v340
      %343 = vrot.lane.b32.xlu0 %v242, 127
      %v344 = vpop.permute.xlu0 %343
      %345 = vrot.lane.b32.xlu0 %v243, 127
      %v346 = vpop.permute.xlu0 %345
      %vm347 = vcmp.lt.s32.totalorder %v245, 127
      %v348 = vsel %vm347, %v344, %v346
      %v349 = vsel %vm347, %v346, %v344
      %v350 = vsel %vm277, 1, 0
      %v351 = vsel %vm278, 1, 0
      %vm352 = vcmp.eq.s32.totalorder %v350, 1
      %vm353 = vcmp.eq.s32.totalorder %v351, 1
      %v354 = vsel %vm352, %v348, 0.0
      %v355 = vsel %vm353, %v349, 0.0
      %v356 = vpack.c.bf16 %v354, %v354
      %v357 = vpack.c.bf16 %v355, %v355
      %358 = vrot.lane.b32.xlu0 %v242, 113
      %v359 = vpop.permute.xlu0 %358
      %360 = vrot.lane.b32.xlu0 %v243, 113
      %v361 = vpop.permute.xlu0 %360
      %vm362 = vcmp.lt.s32.totalorder %v245, 113
      %v363 = vsel %vm362, %v359, %v361
      %v364 = vsel %vm362, %v361, %v359
      %vm365 = vmand %vm273, %vm275
      %vm366 = vmand %vm274, %vm276
      %v367 = vsel %vm365, 1, 0
      %v368 = vsel %vm366, 1, 0
      %vm369 = vcmp.eq.s32.totalorder %v367, 1
      %vm370 = vcmp.eq.s32.totalorder %v368, 1
      %v371 = vsel %vm369, %v363, 0.0
      %v372 = vsel %vm370, %v364, 0.0
      %v373 = vpack.c.bf16 %v371, %v371
      %v374 = vpack.c.bf16 %v372, %v372
      %375 = vrot.lane.b32.xlu0 %v242, 112
      %v376 = vpop.permute.xlu0 %375
      %377 = vrot.lane.b32.xlu0 %v243, 112
      %v378 = vpop.permute.xlu0 %377
      %vm379 = vcmp.lt.s32.totalorder %v245, 112
      %v380 = vsel %vm379, %v376, %v378
      %v381 = vsel %vm379, %v378, %v376
      %v382 = vsel %vm273, 1, 0
      %v383 = vsel %vm274, 1, 0
      %vm384 = vcmp.eq.s32.totalorder %v382, 1
      %vm385 = vcmp.eq.s32.totalorder %v383, 1
      %v386 = vsel %vm384, %v380, 0.0
      %v387 = vsel %vm385, %v381, 0.0
      %v388 = vpack.c.bf16 %v386, %v386
      %v389 = vpack.c.bf16 %v387, %v387
      %390 = vrot.lane.b32.xlu0 %v242, 111
      %v391 = vpop.permute.xlu0 %390
      %392 = vrot.lane.b32.xlu0 %v243, 111
      %v393 = vpop.permute.xlu0 %392
      %vm394 = vcmp.lt.s32.totalorder %v245, 111
      %v395 = vsel %vm394, %v391, %v393
      %v396 = vsel %vm394, %v393, %v391
      %vm397 = vmand %vm273, %vm277
      %vm398 = vmand %vm274, %vm278
      %v399 = vsel %vm397, 1, 0
      %v400 = vsel %vm398, 1, 0
      %vm401 = vcmp.eq.s32.totalorder %v399, 1
      %vm402 = vcmp.eq.s32.totalorder %v400, 1
      %v403 = vsel %vm401, %v395, 0.0
      %v404 = vsel %vm402, %v396, 0.0
      %v405 = vpack.c.bf16 %v403, %v403
      %v406 = vpack.c.bf16 %v404, %v404
      %v409 = vrot.slane %v309, 4
      %v410 = vrot.slane %v310, 4
      %v413 = vrot.slane %v341, 4
      %v414 = vrot.slane %v342, 4
      %v416 = vunpack.c.l.b16 %v241
      %v417 = vunpack.c.h.b16 %v241
      %v418 = vpack.c.b16 %v416, %v416
      %v419 = vpack.c.b16 %v417, %v417
      %v422 = vrot.slane %v356, 4
      %v423 = vrot.slane %v357, 4
      %v426 = vrot.slane %v388, 4
      %v427 = vrot.slane %v389, 4
      %vm428 = vcmask 1043456
      %v431 = vsel %vm428, %v294, %v409
      %v435 = vsel %vm428, %v295, %v410
      %v439 = vsel %vm428, %v326, %v413
      %v443 = vsel %vm428, %v327, %v414
      %v447 = vsel %vm428, %v418, %v422
      %v451 = vsel %vm428, %v419, %v423
      %v455 = vsel %vm428, %v373, %v426
      %v459 = vsel %vm428, %v374, %v427
      %v461 = vld [vmem:[%s221] sm:$0xf]
      %v462 = vld [vmem:[%s221 + $0x4] sm:$0xf]
      %v463 = vld [vmem:[%s227] sm:$0xff]
      %v464 = vld [vmem:[%s227 + $0x8] sm:$0xff]
      %466 = vset.pattern.permute.xlu0 0
      %467 = vperm.xlu0 %466, %v463
      %v468 = vpop.permute.xlu0 %467
      %471 = vset.pattern.permute.xlu0 0
      %472 = vperm.xlu0 %471, %v464
      %v473 = vpop.permute.xlu0 %472
      %v477 = vunpack.c.l.b16 %v461
      %v478 = vunpack.c.l.b16 %v462
      %v479 = vpack.c.b16 %v478, %v477
      %vm480 = vcmask 588800
      %v482 = vsel %vm480, %v479, 0
      %v485 = vsel %vm428, %v405, 0
      %v488 = vsel %vm428, %v406, 0
      %490 = vmatprep.subr.bf16.mxu0 0
      %491 = vmatpush1.bf16.msra.mxu0 0
      %492 = vmatprep.subr.bf16.mxu0 0
      %493 = vmatpush1.bf16.msra.mxu0 0
      %494 = vmatprep.subr.bf16.mxu0 0
      %495 = vmatpush1.bf16.msra.mxu0 0
      %496 = vmatprep.subr.bf16.mxu0 %v488
      %497 = vmatpush1.bf16.msra.mxu0 %v485
      %498 = vmatprep.subr.bf16.mxu0 %v459
      %499 = vmatpush1.bf16.msra.mxu0 %v455
      %500 = vmatprep.subr.bf16.mxu0 %v451
      %501 = vmatpush1.bf16.msra.mxu0 %v447
      %502 = vmatprep.subr.bf16.mxu0 %v443
      %503 = vmatpush1.bf16.msra.mxu0 %v439
      %504 = vmatprep.subr.bf16.mxu0 %v435
      %505 = vmatpush1.bf16.msra.mxu0 %v431
      %506 = vmatprep.subr.bf16.mxu0 0
      %507 = vmatpush2.bf16.msra.mxu0 0
      %508 = vmatprep.subr.bf16.mxu0 0
      %509 = vmatpush2.bf16.msra.mxu0 0
      %510 = vmatprep.subr.bf16.mxu0 0
      %511 = vmatpush2.bf16.msra.mxu0 0
      %512 = vmatprep.subr.bf16.mxu0 0
      %513 = vmatpush2.bf16.msra.mxu0 0
      %514 = vmatprep.subr.bf16.mxu0 0
      %515 = vmatpush2.bf16.msra.mxu0 0
      %516 = vmatprep.subr.bf16.mxu0 0
      %517 = vmatpush2.bf16.msra.mxu0 0
      %518 = vmatprep.subr.bf16.mxu0 0
      %519 = vmatpush2.bf16.msra.mxu0 0
      %520 = vmatprep.subr.bf16.mxu0 0
      %521 = vmatpush2.bf16.msra.mxu0 0
      %522 = vmatprep.mubr.bf16.mxu0 0
      %523 = vmatmul.mubr.bf16.gmra.mxu0 %v482
      %v524 = vpop.f32.mrf.mxu0
      %v525 = vadd.f32 %v468, %v524
      %v526 = vpop.f32.mrf.mxu0
      %v527 = vadd.f32 %v468, %v526
      %v528 = vpop.f32.mrf.mxu0
      %v529 = vadd.f32 %v473, %v528
      %v530 = vpop.f32.mrf.mxu0
      %v531 = vadd.f32 %v473, %v530
      %532 = vdwg.mxu0
      %533 = vst [vmem:[%s238] sm:$0xff] %v525
      %534 = vst [vmem:[%s238 + $0x8] sm:$0xff] %v527
      %535 = vst [vmem:[%s238 + $0x10] sm:$0xff] %v529
      %536 = vst [vmem:[%s238 + $0x18] sm:$0xff] %v531
      %s537 = smul.u32 2, %s19
      %p538 = scmp.lt.s32.totalorder %s18, 1
      %s539 = scalar_select %p538, %s18, 1
      %p540 = scmp.lt.s32.totalorder %s537, 3
      %s541 = scalar_select %p540, %s537, 3
      %s542 = smul.addr %s541, 2
      %s543 = smul.addr %s539, 8
      %s544 = sadd.s32 %s542, %s543
      %s545 = smul.addr %s544, 8
      %s546 = scalar_lea.vmem %s3, %s545
      // Predicated region
      $region33: #{upsampler_forward.1} parent=31 // pred_check
        %p547 = pneg %p124
      $region34: #{upsampler_forward.1} parent=31 // pred_check_branch
        %549 = sbr.rel (%p547) target = $region36
      $region35: #{upsampler_forward.1} parent=31 // pred_region
        %s550 = smul.u32 2, %s19
      $region36: #{upsampler_forward.1} parent=31 // pred_fallthru
        _
    $region32: #{upsampler_forward.1} parent=5 // pred_fallthru
      _
    %p551 = scmp.le.s32.totalorder 2, %s9
    // Predicated region
    $region37: #{upsampler_forward.1} parent=5 // pred_check
      %p552 = pneg %p551
    $region38: #{upsampler_forward.1} parent=5 // pred_check_branch
      %554 = sbr.rel (%p552) target = $region40
    $region39: #{upsampler_forward.1} parent=5 // pred_region
      %s555 = ssub.s32 %s9, 2
      // Predicated region
      $region41: #{upsampler_forward.1} parent=39 // pred_check
        %p556 = pneg %p130
      $region42: #{upsampler_forward.1} parent=39 // pred_check_branch
        %558 = sbr.rel (%p556) target = $region44
      $region43: #{upsampler_forward.1} parent=39 // pred_region
        %s559 = smul.u32 2, %s21
        %p560 = scmp.lt.s32.totalorder %s20, 1
        %s561 = scalar_select %p560, %s20, 1
        %p562 = scmp.lt.s32.totalorder %s559, 3
        %s563 = scalar_select %p562, %s559, 3
        %s564 = smul.addr %s563, 2
        %s565 = smul.addr %s561, 8
        %s566 = sadd.s32 %s564, %s565
        %s567 = smul.addr %s566, 8
        %s568 = scalar_lea.vmem %s3, %s567
      $region44: #{upsampler_forward.1} parent=39 // pred_fallthru
        _
    $region40: #{upsampler_forward.1} parent=5 // pred_fallthru
      _
  $region6: #{upsampler_forward.1} parent=0 // loop_footer
    %s13 = sadd.s32 1, %s9
  $region7: #{upsampler_forward.1} parent=0 // loop_footer_branch
    %8 = sbr.rel target = $region3
  $region8: #{upsampler_forward.1} parent=0 // loop_exit
    _

</llo_original>
